<compile_context>
chip_gen: v6e
topology: v6e:2x2x1
jax: 0.10.0
libtpu: 0.0.40
codegen_flags: <defaults>
</compile_context>

<pallas_src>
import functools
import math

import jax
import jax.numpy as jnp
from jax.experimental import pallas as pl
from jax.experimental.pallas import tpu as pltpu

_LN_EPS = 1e-5  # PyTorch nn.LayerNorm default eps


def _vmem_capacity_bytes():
    try:
        return int(pltpu.get_tpu_info().vmem_capacity_bytes)
    except Exception:
        return 64 << 20  # conservative fallback (v7x per-TC VMEM)


def _round_up(x, m):
    return ((x + m - 1) // m) * m


def _pick_tff(d_ff, requested):
    """Largest lane-aligned (multiple of 128) divisor of d_ff not exceeding `requested`.

    Requiring an exact divisor keeps every W1/W2 block full (no garbage in a partial
    d_ff edge block leaking into the accumulator)."""
    if d_ff <= requested:
        return d_ff
    t = (requested // 128) * 128
    while t >= 128:
        if d_ff % t == 0:
            return t
        t -= 128
    return d_ff


def _ffn_kernel(x_ref, w1_ref, w2_ref, o_ref, acc_ref, ln_bf_ref):
    # x_ref : (tm, d_in) activations (input dtype), constant across the d_ff axis
    # w1_ref: (d_in, tff) bf16      w2_ref: (tff, d_in) bf16
    # acc_ref: (tm, d_in) f32 scratch      ln_bf_ref: (tm, d_in) bf16 scratch
    k = pl.program_id(1)

    @pl.when(k == 0)
    def _init():
        # LayerNorm(d_in) with default affine (gamma=1, beta=0); computed once per row
        # tile, reused for the residual term and for every d_ff chunk.
        x = x_ref[...].astype(jnp.float32)
        mu = jnp.mean(x, axis=-1, keepdims=True)
        xc = x - mu
        var = jnp.mean(xc * xc, axis=-1, keepdims=True)      # biased variance (PyTorch LN)
        ln = xc * jax.lax.rsqrt(var + _LN_EPS)
        acc_ref[...] = ln                                     # residual: LayerNorm(residual)
        ln_bf_ref[...] = ln.astype(jnp.bfloat16)              # MXU operand

    # One d_ff chunk of the FFN: relu(ln @ W1[:, k_chunk]) @ W2[k_chunk, :], f32 accumulate.
    h = jnp.dot(ln_bf_ref[...], w1_ref[...], preferred_element_type=jnp.float32)
    h = jnp.maximum(h, 0.0)
    acc_ref[...] += jnp.dot(h.astype(jnp.bfloat16), w2_ref[...],
                            preferred_element_type=jnp.float32)

    @pl.when(k == pl.num_programs(1) - 1)
    def _store():
        o_ref[...] = acc_ref[...].astype(o_ref.dtype)


@functools.partial(jax.jit, static_argnames=("tm", "tff"))
def poswise_ffn_forward(inputs, w1, w2, *, tm=256, tff=512):
    """inputs: (..., d_in); w1: (d_in, d_ff) bf16; w2: (d_ff, d_in) bf16."""
    *lead, d_in = inputs.shape
    d_ff = w1.shape[1]
    M = math.prod(lead) if lead else 1

    x2 = inputs.reshape(M, d_in)  # no pad / slice: edge row blocks are write-masked

    tm_eff = max(8, min(_round_up(tm, 8), _round_up(M, 8)))
    tff_eff = _pick_tff(d_ff, tff)
    kt = d_ff // tff_eff
    grid = (pl.cdiv(M, tm_eff), kt)

    if kt == 1:
        # Constant index_map -> weight block never changes; single-buffer to halve VMEM.
        w1_spec = pl.BlockSpec((d_in, tff_eff), lambda i, k: (0, 0),
                               pipeline_mode=pl.Buffered(1))
        w2_spec = pl.BlockSpec((tff_eff, d_in), lambda i, k: (0, 0),
                               pipeline_mode=pl.Buffered(1))
    else:
        w1_spec = pl.BlockSpec((d_in, tff_eff), lambda i, k: (0, k))
        w2_spec = pl.BlockSpec((tff_eff, d_in), lambda i, k: (k, 0))

    # VMEM budget estimate -> scoped VMEM limit (leave headroom, cap at physical VMEM).
    act_bytes = jnp.dtype(inputs.dtype).itemsize
    w_bufs = 1 if kt == 1 else 2
    est = (2 * tm_eff * d_in * act_bytes            # input row tile (double-buffered)
           + 2 * tm_eff * d_in * act_bytes          # output row tile (double-buffered)
           + w_bufs * d_in * tff_eff * 2            # W1 block(s), bf16
           + w_bufs * tff_eff * d_in * 2            # W2 block(s), bf16
           + tm_eff * d_in * (4 + 2)                # acc (f32) + ln_bf (bf16) scratch
           + tm_eff * tff_eff * (4 + 2))            # hidden tile f32 + bf16 cast
    vmem_limit = int(min(max(2 * est, 32 << 20), int(0.9 * _vmem_capacity_bytes())))

    out = pl.pallas_call(
        _ffn_kernel,
        out_shape=jax.ShapeDtypeStruct((M, d_in), inputs.dtype),
        grid_spec=pltpu.PrefetchScalarGridSpec(
            num_scalar_prefetch=0,
            grid=grid,
            in_specs=[
                pl.BlockSpec((tm_eff, d_in), lambda i, k: (i, 0)),  # row tile (const over k)
                w1_spec,
                w2_spec,
            ],
            out_specs=pl.BlockSpec((tm_eff, d_in), lambda i, k: (i, 0)),
            scratch_shapes=[
                pltpu.VMEM((tm_eff, d_in), jnp.float32),    # accumulator (residual + FFN)
                pltpu.VMEM((tm_eff, d_in), jnp.bfloat16),   # LayerNorm output for the MXU
            ],
        ),
        compiler_params=pltpu.CompilerParams(
            dimension_semantics=("parallel", "arbitrary"),  # rows sharded, d_ff reduced
            vmem_limit_bytes=vmem_limit,
        ),
    )(x2, w1, w2)

    return out.reshape(inputs.shape)


def poswise_ffn_reference(inputs, w1, w2):
    """Pure-JAX f32 reference of the PyTorch forward (for correctness checking)."""
    x = inputs.astype(jnp.float32)
    mu = jnp.mean(x, axis=-1, keepdims=True)
    xc = x - mu
    var = jnp.mean(xc * xc, axis=-1, keepdims=True)
    ln = xc * jax.lax.rsqrt(var + _LN_EPS)
    h = jnp.maximum(ln @ w1.astype(jnp.float32), 0.0)
    return ln + h @ w2.astype(jnp.float32)


if __name__ == "__main__":
    key = jax.random.PRNGKey(0)
    k_x, k_w1, k_w2 = jax.random.split(key, 3)

    B, S, d_in, d_ff = 2, 8, 128, 512

    inputs = jax.random.normal(k_x, (B, S, d_in), jnp.float32)
    # fc weights (bias=False), kernel-ready layout (in, out) == nn.Linear.weight transposed.
    w1 = (0.1 * jax.random.normal(k_w1, (d_in, d_ff), jnp.float32)).astype(jnp.bfloat16)
    w2 = (0.1 * jax.random.normal(k_w2, (d_ff, d_in), jnp.float32)).astype(jnp.bfloat16)

    ref = poswise_ffn_reference(inputs, w1, w2)

    # Default config: single d_ff block, weights single-buffered and VMEM-resident.
    out = jax.block_until_ready(poswise_ffn_forward(inputs, w1, w2))
    assert out.shape == (B, S, d_in), out.shape
    assert bool(jnp.all(jnp.isfinite(out)))
    assert bool(jnp.allclose(out, ref, rtol=5e-2, atol=5e-2)), (
        float(jnp.max(jnp.abs(out - ref))))

    # Exercise the d_ff-reduction path (multiple row tiles, 4 accumulation steps).
    out2 = jax.block_until_ready(poswise_ffn_forward(inputs, w1, w2, tm=8, tff=128))
    assert bool(jnp.allclose(out2, ref, rtol=5e-2, atol=5e-2)), (
        float(jnp.max(jnp.abs(out2 - ref))))

    print("KERNEL_OK")
</pallas_src>

<mosaic_0001>
module attributes {stable_mosaic.version = 11 : i64} {
  func.func @_ffn_kernel(%arg0: i32, %arg1: i32, %arg2: memref<16x128xf32, #tpu.memory_space<vmem>>, %arg3: memref<128x512xbf16, #tpu.memory_space<vmem>>, %arg4: memref<512x128xbf16, #tpu.memory_space<vmem>>, %arg5: memref<16x128xf32, #tpu.memory_space<vmem>>, %arg6: memref<16x128xf32, #tpu.memory_space<vmem>>, %arg7: memref<16x128xbf16, #tpu.memory_space<vmem>>) attributes {dimension_semantics = [#tpu.dimension_semantics<parallel>, #tpu.dimension_semantics<arbitrary>], iteration_bounds = array<i64: 1, 1>, scalar_prefetch = 0 : i64, scratch_operands = 2 : i64, tpu.core_type = #tpu.core_type<tc>, window_params = [{transform_indices = @transform_0, window_bounds = array<i64: 16, 128>}, {pipeline_mode = #tpu.pipeline_mode<synchronous>, transform_indices = @transform_1, window_bounds = array<i64: 128, 512>}, {pipeline_mode = #tpu.pipeline_mode<synchronous>, transform_indices = @transform_2, window_bounds = array<i64: 512, 128>}, {transform_indices = @transform_3, window_bounds = array<i64: 16, 128>}]} {
    %c0_i32 = arith.constant 0 : i32
    %0 = arith.cmpi eq, %arg1, %c0_i32 : i32
    %1 = arith.extui %0 : i1 to i32
    %c0_i32_0 = arith.constant 0 : i32
    %2 = arith.cmpi ne, %1, %c0_i32_0 : i32
    scf.if %2 {
      %c0_14 = arith.constant 0 : index
      %c0_15 = arith.constant 0 : index
      %17 = vector.load %arg2[%c0_14, %c0_15] : memref<16x128xf32, #tpu.memory_space<vmem>>, vector<16x128xf32>
      %cst_16 = arith.constant dense<0.000000e+00> : vector<16xf32>
      %18 = vector.multi_reduction <add>, %17, %cst_16 [1] : vector<16x128xf32> to vector<16xf32>
      %19 = vector.shape_cast %18 : vector<16xf32> to vector<16x1xf32>
      %cst_17 = arith.constant 1.280000e+02 : f32
      %20 = vector.broadcast %cst_17 : f32 to vector<16x1xf32>
      %21 = arith.divf %19, %20 : vector<16x1xf32>
      %22 = vector.broadcast %21 : vector<16x1xf32> to vector<16x128xf32>
      %23 = arith.subf %17, %22 : vector<16x128xf32>
      %24 = arith.mulf %23, %23 : vector<16x128xf32>
      %cst_18 = arith.constant dense<0.000000e+00> : vector<16xf32>
      %25 = vector.multi_reduction <add>, %24, %cst_18 [1] : vector<16x128xf32> to vector<16xf32>
      %26 = vector.shape_cast %25 : vector<16xf32> to vector<16x1xf32>
      %cst_19 = arith.constant 1.280000e+02 : f32
      %27 = vector.broadcast %cst_19 : f32 to vector<16x1xf32>
      %28 = arith.divf %26, %27 : vector<16x1xf32>
      %cst_20 = arith.constant 9.99999974E-6 : f32
      %29 = vector.broadcast %cst_20 : f32 to vector<16x1xf32>
      %30 = arith.addf %28, %29 : vector<16x1xf32>
      %31 = math.rsqrt %30 : vector<16x1xf32>
      %32 = vector.broadcast %31 : vector<16x1xf32> to vector<16x128xf32>
      %33 = arith.mulf %23, %32 : vector<16x128xf32>
      %c0_21 = arith.constant 0 : index
      %c0_22 = arith.constant 0 : index
      %34 = vector.load %arg6[%c0_21, %c0_22] : memref<16x128xf32, #tpu.memory_space<vmem>>, vector<16x128xf32>
      tpu.vector_store %arg6[%c0_21, %c0_22], %33 {strides = array<i32>} : memref<16x128xf32, #tpu.memory_space<vmem>>, vector<16x128xf32>,
      %35 = arith.truncf %33 : vector<16x128xf32> to vector<16x128xbf16>
      %c0_23 = arith.constant 0 : index
      %c0_24 = arith.constant 0 : index
      %36 = vector.load %arg7[%c0_23, %c0_24] : memref<16x128xbf16, #tpu.memory_space<vmem>>, vector<16x128xbf16>
      tpu.vector_store %arg7[%c0_23, %c0_24], %35 {strides = array<i32>} : memref<16x128xbf16, #tpu.memory_space<vmem>>, vector<16x128xbf16>,
    } else {
    }
    %c0 = arith.constant 0 : index
    %c0_1 = arith.constant 0 : index
    %3 = vector.load %arg7[%c0, %c0_1] : memref<16x128xbf16, #tpu.memory_space<vmem>>, vector<16x128xbf16>
    %c0_2 = arith.constant 0 : index
    %c0_3 = arith.constant 0 : index
    %4 = vector.load %arg3[%c0_2, %c0_3] : memref<128x512xbf16, #tpu.memory_space<vmem>>, vector<128x512xbf16>
    %cst = arith.constant dense<0.000000e+00> : vector<16x512xf32>
    %5 = tpu.matmul %3, %4, %cst {dimension_numbers = #tpu.dot_dimension_numbers<[1], [0], [0], [1], [0, 0, 1, 1], [], []>} : vector<16x128xbf16>, vector<128x512xbf16>, vector<16x512xf32> -> vector<16x512xf32>
    %cst_4 = arith.constant 0.000000e+00 : f32
    %6 = vector.broadcast %cst_4 : f32 to vector<16x512xf32>
    %7 = arith.maximumf %5, %6 : vector<16x512xf32>
    %c0_5 = arith.constant 0 : index
    %c0_6 = arith.constant 0 : index
    %8 = vector.load %arg6[%c0_5, %c0_6] : memref<16x128xf32, #tpu.memory_space<vmem>>, vector<16x128xf32>
    %9 = arith.truncf %7 : vector<16x512xf32> to vector<16x512xbf16>
    %c0_7 = arith.constant 0 : index
    %c0_8 = arith.constant 0 : index
    %10 = vector.load %arg4[%c0_7, %c0_8] : memref<512x128xbf16, #tpu.memory_space<vmem>>, vector<512x128xbf16>
    %cst_9 = arith.constant dense<0.000000e+00> : vector<16x128xf32>
    %11 = tpu.matmul %9, %10, %cst_9 {dimension_numbers = #tpu.dot_dimension_numbers<[1], [0], [0], [1], [0, 0, 1, 1], [], []>} : vector<16x512xbf16>, vector<512x128xbf16>, vector<16x128xf32> -> vector<16x128xf32>
    %12 = arith.addf %8, %11 : vector<16x128xf32>
    %c0_10 = arith.constant 0 : index
    %c0_11 = arith.constant 0 : index
    %13 = vector.load %arg6[%c0_10, %c0_11] : memref<16x128xf32, #tpu.memory_space<vmem>>, vector<16x128xf32>
    tpu.vector_store %arg6[%c0_10, %c0_11], %12 {strides = array<i32>} : memref<16x128xf32, #tpu.memory_space<vmem>>, vector<16x128xf32>,
    %c0_i32_12 = arith.constant 0 : i32
    %14 = arith.cmpi eq, %arg1, %c0_i32_12 : i32
    %15 = arith.extui %14 : i1 to i32
    %c0_i32_13 = arith.constant 0 : i32
    %16 = arith.cmpi ne, %15, %c0_i32_13 : i32
    scf.if %16 {
      %c0_14 = arith.constant 0 : index
      %c0_15 = arith.constant 0 : index
      %17 = vector.load %arg6[%c0_14, %c0_15] : memref<16x128xf32, #tpu.memory_space<vmem>>, vector<16x128xf32>
      %c0_16 = arith.constant 0 : index
      %c0_17 = arith.constant 0 : index
      %18 = vector.load %arg5[%c0_16, %c0_17] : memref<16x128xf32, #tpu.memory_space<vmem>>, vector<16x128xf32>
      tpu.vector_store %arg5[%c0_16, %c0_17], %17 {strides = array<i32>} : memref<16x128xf32, #tpu.memory_space<vmem>>, vector<16x128xf32>,
    } else {
    }
    return
  }
  func.func @transform_0(%arg0: i32, %arg1: i32) -> (i32, i32) {
    %c0_i32 = arith.constant 0 : i32
    %c0_i32_0 = arith.constant 0 : i32
    return %arg0, %c0_i32 : i32, i32
  }
  func.func @transform_1(%arg0: i32, %arg1: i32) -> (i32, i32) {
    %c0_i32 = arith.constant 0 : i32
    %c0_i32_0 = arith.constant 0 : i32
    %c0_i32_1 = arith.constant 0 : i32
    return %c0_i32, %c0_i32_0 : i32, i32
  }
  func.func @transform_2(%arg0: i32, %arg1: i32) -> (i32, i32) {
    %c0_i32 = arith.constant 0 : i32
    %c0_i32_0 = arith.constant 0 : i32
    %c0_i32_1 = arith.constant 0 : i32
    return %c0_i32, %c0_i32_0 : i32, i32
  }
  func.func @transform_3(%arg0: i32, %arg1: i32) -> (i32, i32) {
    %c0_i32 = arith.constant 0 : i32
    %c0_i32_0 = arith.constant 0 : i32
    return %arg0, %c0_i32 : i32, i32
  }
}

</mosaic_0001>

<llo_original>
// kernel: poswise_ffn_forward.1
$region0: #{poswise_ffn_forward.1}
  #allocation0 [shape = 'u32[]', space=smem, size = 0x4, offset = 0x4, fixed_abs, tag = 'smem constant byte address 0x4 - core index']
  #allocation1 [shape = 'u32[144,128]{1,0:T(1,128)}', space=vmem, size = 0x12000, scoped, tag = 'internal scratch']
  #allocation2 [shape = 'f32[16,128]{1,0:T(8,128)}', space=vmem, size = 0x2000, scoped, tag = 'scratch operand']
  #allocation3 [shape = 'bf16[16,128]{1,0:T(8,128)(2,1)}', space=vmem, size = 0x1000, scoped, tag = 'scratch operand']
  %s0 = inlined_call_operand.hbm [shape: f32[16,128], index: 0, kind: input, shape index: {}]
  %s1 = inlined_call_operand.hbm [shape: bf16[128,512], index: 1, kind: input, shape index: {}]
  %s2 = inlined_call_operand.hbm [shape: bf16[512,128], index: 2, kind: input, shape index: {}]
  %s3 = inlined_call_operand.hbm [shape: f32[16,128], index: 3, kind: output, shape index: {}]
  %s4 = sld [smem:[#allocation0]]
  $region42: #{poswise_ffn_forward.1} parent=0
    _
  %s6 = ssub.s32 1, %s4
  %s7 = scalar_select 0, %s6, %s4
  $region1: #{poswise_ffn_forward.1} parent=0
    #allocation4 [shape = 'u8[8192]{0}', space=vmem, size = 0x2000, scoped, tag = 'input window, operand 0, single buffered']
    #allocation5 [shape = 's32[1]{0}', space=sflag, size = 0x4, scoped, tag = 'scoped memory for poswise_ffn_forward.1']
    #allocation6 [shape = 's32[1]{0}', space=sflag, size = 0x4, scoped, tag = 'scoped memory for poswise_ffn_forward.1']
    #allocation7 [shape = 'u8[131072]{0}', space=vmem, size = 0x20000, scoped, tag = 'input window, operand 1, single buffered']
    #allocation8 [shape = 's32[1]{0}', space=sflag, size = 0x4, scoped, tag = 'scoped memory for poswise_ffn_forward.1']
    #allocation9 [shape = 'u8[131072]{0}', space=vmem, size = 0x20000, scoped, tag = 'input window, operand 2, single buffered']
    #allocation10 [shape = 'u8[8192]{0}', space=vmem, size = 0x2000, scoped, tag = 'output window, operand 0, single buffered']
    %8 = vsyncpa [#allocation5], 0
    %9 = vsyncpa [#allocation8], 0
    %10 = vsyncpa [#allocation6], 0
    // Predicated region
    $region2: #{poswise_ffn_forward.1} parent=1 // pred_check
      _
    $region3: #{poswise_ffn_forward.1} parent=1 // pred_check_branch
      %12 = sbr.rel (0) target = $region5
    $region4: #{poswise_ffn_forward.1} parent=1 // pred_region
      %s14 = ssub.s32 256, 256
      %15 = vsyncadd [#allocation5], %s14
      %s16 = sshll.u32 [#allocation4], 4
      %s17 = int_to_ptr.vmem [resolvable:$true] %s16
      %22 = dma.hbm_to_vmem [thread:$0]  %s0, 256, %s17, [#allocation5], 128, 128, 8
    $region5: #{poswise_ffn_forward.1} parent=1 // pred_fallthru
      _
    // Predicated region
    $region6: #{poswise_ffn_forward.1} parent=1 // pred_check
      _
    $region7: #{poswise_ffn_forward.1} parent=1 // pred_check_branch
      %24 = sbr.rel (0) target = $region9
    $region8: #{poswise_ffn_forward.1} parent=1 // pred_region
      %s26 = ssub.s32 4096, 4096
      %27 = vsyncadd [#allocation8], %s26
      %s28 = sshll.u32 [#allocation7], 4
      %s29 = int_to_ptr.vmem [resolvable:$true] %s28
      %34 = dma.hbm_to_vmem [thread:$0]  %s1, 4096, %s29, [#allocation8], 256, 256, 16
    $region9: #{poswise_ffn_forward.1} parent=1 // pred_fallthru
      _
    // Predicated region
    $region10: #{poswise_ffn_forward.1} parent=1 // pred_check
      _
    $region11: #{poswise_ffn_forward.1} parent=1 // pred_check_branch
      %36 = sbr.rel (0) target = $region13
    $region12: #{poswise_ffn_forward.1} parent=1 // pred_region
      %s38 = ssub.s32 4096, 4096
      %39 = vsyncadd [#allocation8], %s38
      %s40 = sshll.u32 [#allocation9], 4
      %s41 = int_to_ptr.vmem [resolvable:$true] %s40
      %46 = dma.hbm_to_vmem [thread:$0]  %s2, 4096, %s41, [#allocation8], 64, 64, 4
    $region13: #{poswise_ffn_forward.1} parent=1 // pred_fallthru
      _
    // Predicated region
    $region14: #{poswise_ffn_forward.1} parent=1 // pred_check
      _
    $region15: #{poswise_ffn_forward.1} parent=1 // pred_check_branch
      %48 = sbr.rel (0) target = $region17
    $region16: #{poswise_ffn_forward.1} parent=1 // pred_region
      %49 = dma.done [#allocation5], 256
    $region17: #{poswise_ffn_forward.1} parent=1 // pred_fallthru
      _
    // Predicated region
    $region18: #{poswise_ffn_forward.1} parent=1 // pred_check
      _
    $region19: #{poswise_ffn_forward.1} parent=1 // pred_check_branch
      %51 = sbr.rel (0) target = $region21
    $region20: #{poswise_ffn_forward.1} parent=1 // pred_region
      %52 = dma.done [#allocation8], 4096
    $region21: #{poswise_ffn_forward.1} parent=1 // pred_fallthru
      _
    // Predicated region
    $region22: #{poswise_ffn_forward.1} parent=1 // pred_check
      _
    $region23: #{poswise_ffn_forward.1} parent=1 // pred_check_branch
      %54 = sbr.rel (0) target = $region25
    $region24: #{poswise_ffn_forward.1} parent=1 // pred_region
      %55 = dma.done [#allocation8], 4096
    $region25: #{poswise_ffn_forward.1} parent=1 // pred_fallthru
      _
    %p57 = scmp.eq.s32.totalorder 0, 0
    // Predicated region
    $region26: #{poswise_ffn_forward.1} parent=1 // pred_check
      %p58 = pneg %p57
    $region27: #{poswise_ffn_forward.1} parent=1 // pred_check_branch
      %60 = sbr.rel (%p58) target = $region29
    $region28: #{poswise_ffn_forward.1} parent=1 // pred_region
      %v61 = vld [vmem:[#allocation4] sm:$0xff]
      %v62 = vld [vmem:[#allocation4 + $0x8] sm:$0xff]
      %63 = vadd.xlane.f32.xlu0 %v61
      %v64 = vpop.xlane.xlu0 %63
      %65 = vadd.xlane.f32.xlu0 %v62
      %v66 = vpop.xlane.xlu0 %65
      %v67 = vrcp.pop 128.0
      %v68 = vmul.f32 %v64, %v67
      %v69 = vmul.f32 %v66, %v67
      %v70 = vsub.f32 %v61, %v68
      %v71 = vsub.f32 %v62, %v69
      %v72 = vmul.f32 %v70, %v70
      %v73 = vmul.f32 %v71, %v71
      %74 = vadd.xlane.f32.xlu0 %v72
      %v75 = vpop.xlane.xlu0 %74
      %76 = vadd.xlane.f32.xlu0 %v73
      %v77 = vpop.xlane.xlu0 %76
      %v78 = vmul.f32 %v75, %v67
      %v79 = vmul.f32 %v77, %v67
      %v80 = vadd.f32 %v78, 1e-05
      %v81 = vadd.f32 %v79, 1e-05
      %v82 = vrsqrt.pop %v80
      %v83 = vrsqrt.pop %v81
      %v84 = vmul.f32 %v70, %v82
      %v85 = vmul.f32 %v71, %v83
      %86 = vst [vmem:[#allocation2] sm:$0xff] %v84
      %87 = vst [vmem:[#allocation2 + $0x8] sm:$0xff] %v85
      %v88 = vpack.c.bf16 %v85, %v84
      %v90 = vunpack.c.l.b16 %v88
      %v91 = vunpack.c.h.b16 %v88
      %v92 = vpack.c.b16 %v90, %v90
      %v93 = vpack.c.b16 %v91, %v91
      %96 = vst [vmem:[#allocation3] sm:$0xf] %v92
      %97 = vst [vmem:[#allocation3 + $0x4] sm:$0xf] %v93
    $region29: #{poswise_ffn_forward.1} parent=1 // pred_fallthru
      _
    %v98 = vld [vmem:[#allocation3] sm:$0xf]
    %v99 = vld [vmem:[#allocation3 + $0x4] sm:$0xf]
    %v100 = vld [vmem:[#allocation7] sm:$0xff]
    %v101 = vld [vmem:[#allocation7 + $0x8] sm:$0xff]
    %v102 = vld [vmem:[#allocation7 + $0x10] sm:$0xff]
    %v103 = vld [vmem:[#allocation7 + $0x18] sm:$0xff]
    %v104 = vld [vmem:[#allocation7 + $0x20] sm:$0xff]
    %v105 = vld [vmem:[#allocation7 + $0x28] sm:$0xff]
    %v106 = vld [vmem:[#allocation7 + $0x30] sm:$0xff]
    %v107 = vld [vmem:[#allocation7 + $0x38] sm:$0xff]
    %v108 = vld [vmem:[#allocation7 + $0x40] sm:$0xff]
    %v109 = vld [vmem:[#allocation7 + $0x48] sm:$0xff]
    %v110 = vld [vmem:[#allocation7 + $0x50] sm:$0xff]
    %v111 = vld [vmem:[#allocation7 + $0x58] sm:$0xff]
    %v112 = vld [vmem:[#allocation7 + $0x60] sm:$0xff]
    %v113 = vld [vmem:[#allocation7 + $0x68] sm:$0xff]
    %v114 = vld [vmem:[#allocation7 + $0x70] sm:$0xff]
    %v115 = vld [vmem:[#allocation7 + $0x78] sm:$0xff]
    %v116 = vld [vmem:[#allocation7 + $0x80] sm:$0xff]
    %v117 = vld [vmem:[#allocation7 + $0x88] sm:$0xff]
    %v118 = vld [vmem:[#allocation7 + $0x90] sm:$0xff]
    %v119 = vld [vmem:[#allocation7 + $0x98] sm:$0xff]
    %v120 = vld [vmem:[#allocation7 + $0xa0] sm:$0xff]
    %v121 = vld [vmem:[#allocation7 + $0xa8] sm:$0xff]
    %v122 = vld [vmem:[#allocation7 + $0xb0] sm:$0xff]
    %v123 = vld [vmem:[#allocation7 + $0xb8] sm:$0xff]
    %v124 = vld [vmem:[#allocation7 + $0xc0] sm:$0xff]
    %v125 = vld [vmem:[#allocation7 + $0xc8] sm:$0xff]
    %v126 = vld [vmem:[#allocation7 + $0xd0] sm:$0xff]
    %v127 = vld [vmem:[#allocation7 + $0xd8] sm:$0xff]
    %v128 = vld [vmem:[#allocation7 + $0xe0] sm:$0xff]
    %v129 = vld [vmem:[#allocation7 + $0xe8] sm:$0xff]
    %v130 = vld [vmem:[#allocation7 + $0xf0] sm:$0xff]
    %v131 = vld [vmem:[#allocation7 + $0xf8] sm:$0xff]
    %v134 = vunpack.c.l.b16 %v98
    %v135 = vunpack.c.l.b16 %v99
    %v136 = vpack.c.b16 %v135, %v134
    %v170 = vunpack.c.l.b16 %v100
    %v171 = vunpack.c.h.b16 %v100
    %v172 = vunpack.c.l.b16 %v101
    %v173 = vunpack.c.h.b16 %v101
    %v174 = vunpack.c.l.b16 %v102
    %v175 = vunpack.c.h.b16 %v102
    %v176 = vunpack.c.l.b16 %v103
    %v177 = vunpack.c.h.b16 %v103
    %v178 = vunpack.c.l.b16 %v104
    %v179 = vunpack.c.h.b16 %v104
    %v180 = vunpack.c.l.b16 %v105
    %v181 = vunpack.c.h.b16 %v105
    %v182 = vunpack.c.l.b16 %v106
    %v183 = vunpack.c.h.b16 %v106
    %v184 = vunpack.c.l.b16 %v107
    %v185 = vunpack.c.h.b16 %v107
    %v186 = vunpack.c.l.b16 %v108
    %v187 = vunpack.c.h.b16 %v108
    %v188 = vunpack.c.l.b16 %v109
    %v189 = vunpack.c.h.b16 %v109
    %v190 = vunpack.c.l.b16 %v110
    %v191 = vunpack.c.h.b16 %v110
    %v192 = vunpack.c.l.b16 %v111
    %v193 = vunpack.c.h.b16 %v111
    %v194 = vunpack.c.l.b16 %v112
    %v195 = vunpack.c.h.b16 %v112
    %v196 = vunpack.c.l.b16 %v113
    %v197 = vunpack.c.h.b16 %v113
    %v198 = vunpack.c.l.b16 %v114
    %v199 = vunpack.c.h.b16 %v114
    %v200 = vunpack.c.l.b16 %v115
    %v201 = vunpack.c.h.b16 %v115
    %v202 = vunpack.c.l.b16 %v116
    %v203 = vunpack.c.h.b16 %v116
    %v204 = vunpack.c.l.b16 %v117
    %v205 = vunpack.c.h.b16 %v117
    %v206 = vunpack.c.l.b16 %v118
    %v207 = vunpack.c.h.b16 %v118
    %v208 = vunpack.c.l.b16 %v119
    %v209 = vunpack.c.h.b16 %v119
    %v210 = vunpack.c.l.b16 %v120
    %v211 = vunpack.c.h.b16 %v120
    %v212 = vunpack.c.l.b16 %v121
    %v213 = vunpack.c.h.b16 %v121
    %v214 = vunpack.c.l.b16 %v122
    %v215 = vunpack.c.h.b16 %v122
    %v216 = vunpack.c.l.b16 %v123
    %v217 = vunpack.c.h.b16 %v123
    %v218 = vunpack.c.l.b16 %v124
    %v219 = vunpack.c.h.b16 %v124
    %v220 = vunpack.c.l.b16 %v125
    %v221 = vunpack.c.h.b16 %v125
    %v222 = vunpack.c.l.b16 %v126
    %v223 = vunpack.c.h.b16 %v126
    %v224 = vunpack.c.l.b16 %v127
    %v225 = vunpack.c.h.b16 %v127
    %v226 = vunpack.c.l.b16 %v128
    %v227 = vunpack.c.h.b16 %v128
    %v228 = vunpack.c.l.b16 %v129
    %v229 = vunpack.c.h.b16 %v129
    %v230 = vunpack.c.l.b16 %v130
    %v231 = vunpack.c.h.b16 %v130
    %v232 = vunpack.c.l.b16 %v131
    %v233 = vunpack.c.h.b16 %v131
    %v234 = vpack.c.b16 %v174, %v170
    %v235 = vpack.c.b16 %v175, %v171
    %v236 = vpack.c.b16 %v176, %v172
    %v237 = vpack.c.b16 %v177, %v173
    %v238 = vpack.c.b16 %v182, %v178
    %v239 = vpack.c.b16 %v183, %v179
    %v240 = vpack.c.b16 %v184, %v180
    %v241 = vpack.c.b16 %v185, %v181
    %v242 = vpack.c.b16 %v190, %v186
    %v243 = vpack.c.b16 %v191, %v187
    %v244 = vpack.c.b16 %v192, %v188
    %v245 = vpack.c.b16 %v193, %v189
    %v246 = vpack.c.b16 %v198, %v194
    %v247 = vpack.c.b16 %v199, %v195
    %v248 = vpack.c.b16 %v200, %v196
    %v249 = vpack.c.b16 %v201, %v197
    %v250 = vpack.c.b16 %v206, %v202
    %v251 = vpack.c.b16 %v207, %v203
    %v252 = vpack.c.b16 %v208, %v204
    %v253 = vpack.c.b16 %v209, %v205
    %v254 = vpack.c.b16 %v214, %v210
    %v255 = vpack.c.b16 %v215, %v211
    %v256 = vpack.c.b16 %v216, %v212
    %v257 = vpack.c.b16 %v217, %v213
    %v258 = vpack.c.b16 %v222, %v218
    %v259 = vpack.c.b16 %v223, %v219
    %v260 = vpack.c.b16 %v224, %v220
    %v261 = vpack.c.b16 %v225, %v221
    %v262 = vpack.c.b16 %v230, %v226
    %v263 = vpack.c.b16 %v231, %v227
    %v264 = vpack.c.b16 %v232, %v228
    %v265 = vpack.c.b16 %v233, %v229
    %298 = vmatprep.subr.bf16.mxu0 %v263
    %299 = vmatpush1.bf16.msra.mxu0 %v262
    %300 = vmatprep.subr.bf16.mxu0 %v259
    %301 = vmatpush1.bf16.msra.mxu0 %v258
    %302 = vmatprep.subr.bf16.mxu0 %v255
    %303 = vmatpush1.bf16.msra.mxu0 %v254
    %304 = vmatprep.subr.bf16.mxu0 %v251
    %305 = vmatpush1.bf16.msra.mxu0 %v250
    %306 = vmatprep.subr.bf16.mxu0 %v247
    %307 = vmatpush1.bf16.msra.mxu0 %v246
    %308 = vmatprep.subr.bf16.mxu0 %v243
    %309 = vmatpush1.bf16.msra.mxu0 %v242
    %310 = vmatprep.subr.bf16.mxu0 %v239
    %311 = vmatpush1.bf16.msra.mxu0 %v238
    %312 = vmatprep.subr.bf16.mxu0 %v235
    %313 = vmatpush1.bf16.msra.mxu0 %v234
    %314 = vmatprep.subr.bf16.mxu0 0
    %315 = vmatpush2.bf16.msra.mxu0 0
    %316 = vmatprep.subr.bf16.mxu0 0
    %317 = vmatpush2.bf16.msra.mxu0 0
    %318 = vmatprep.subr.bf16.mxu0 0
    %319 = vmatpush2.bf16.msra.mxu0 0
    %320 = vmatprep.subr.bf16.mxu0 0
    %321 = vmatpush2.bf16.msra.mxu0 0
    %322 = vmatprep.subr.bf16.mxu0 0
    %323 = vmatpush2.bf16.msra.mxu0 0
    %324 = vmatprep.subr.bf16.mxu0 0
    %325 = vmatpush2.bf16.msra.mxu0 0
    %326 = vmatprep.subr.bf16.mxu0 0
    %327 = vmatpush2.bf16.msra.mxu0 0
    %328 = vmatprep.subr.bf16.mxu0 0
    %329 = vmatpush2.bf16.msra.mxu0 0
    %330 = vmatprep.mubr.bf16.mxu0 0
    %331 = vmatmul.mubr.bf16.gmra.mxu0 %v136
    %v332 = vpop.f32.mrf.mxu0
    %v333 = vadd.f32 0.0, %v332
    %v334 = vpop.f32.mrf.mxu0
    %v335 = vadd.f32 0.0, %v334
    %v336 = vpop.f32.mrf.mxu0
    %v337 = vadd.f32 0.0, %v336
    %v338 = vpop.f32.mrf.mxu0
    %v339 = vadd.f32 0.0, %v338
    %340 = vdwg.mxu0
    %341 = vmatprep.subr.bf16.mxu0 %v265
    %342 = vmatpush1.bf16.msra.mxu0 %v264
    %343 = vmatprep.subr.bf16.mxu0 %v261
    %344 = vmatpush1.bf16.msra.mxu0 %v260
    %345 = vmatprep.subr.bf16.mxu0 %v257
    %346 = vmatpush1.bf16.msra.mxu0 %v256
    %347 = vmatprep.subr.bf16.mxu0 %v253
    %348 = vmatpush1.bf16.msra.mxu0 %v252
    %349 = vmatprep.subr.bf16.mxu0 %v249
    %350 = vmatpush1.bf16.msra.mxu0 %v248
    %351 = vmatprep.subr.bf16.mxu0 %v245
    %352 = vmatpush1.bf16.msra.mxu0 %v244
    %353 = vmatprep.subr.bf16.mxu0 %v241
    %354 = vmatpush1.bf16.msra.mxu0 %v240
    %355 = vmatprep.subr.bf16.mxu0 %v237
    %356 = vmatpush1.bf16.msra.mxu0 %v236
    %357 = vmatprep.subr.bf16.mxu0 0
    %358 = vmatpush2.bf16.msra.mxu0 0
    %359 = vmatprep.subr.bf16.mxu0 0
    %360 = vmatpush2.bf16.msra.mxu0 0
    %361 = vmatprep.subr.bf16.mxu0 0
    %362 = vmatpush2.bf16.msra.mxu0 0
    %363 = vmatprep.subr.bf16.mxu0 0
    %364 = vmatpush2.bf16.msra.mxu0 0
    %365 = vmatprep.subr.bf16.mxu0 0
    %366 = vmatpush2.bf16.msra.mxu0 0
    %367 = vmatprep.subr.bf16.mxu0 0
    %368 = vmatpush2.bf16.msra.mxu0 0
    %369 = vmatprep.subr.bf16.mxu0 0
    %370 = vmatpush2.bf16.msra.mxu0 0
    %371 = vmatprep.subr.bf16.mxu0 0
    %372 = vmatpush2.bf16.msra.mxu0 0
    %373 = vmatprep.mubr.bf16.mxu0 0
    %374 = vmatmul.mubr.bf16.gmra.mxu0 %v136
    %v375 = vpop.f32.mrf.mxu0
    %v376 = vadd.f32 0.0, %v375
    %v377 = vpop.f32.mrf.mxu0
    %v378 = vadd.f32 0.0, %v377
    %v379 = vpop.f32.mrf.mxu0
    %v380 = vadd.f32 0.0, %v379
    %v381 = vpop.f32.mrf.mxu0
    %v382 = vadd.f32 0.0, %v381
    %383 = vdwg.mxu0
    %v384 = vmax.f32 %v333, 0.0
    %v385 = vmax.f32 %v335, 0.0
    %v386 = vmax.f32 %v376, 0.0
    %v387 = vmax.f32 %v378, 0.0
    %v388 = vmax.f32 %v337, 0.0
    %v389 = vmax.f32 %v339, 0.0
    %v390 = vmax.f32 %v380, 0.0
    %v391 = vmax.f32 %v382, 0.0
    %v392 = vld [vmem:[#allocation2] sm:$0xff]
    %v393 = vld [vmem:[#allocation2 + $0x8] sm:$0xff]
    %v394 = vpack.c.bf16 %v388, %v384
    %v395 = vpack.c.bf16 %v389, %v385
    %v396 = vpack.c.bf16 %v390, %v386
    %v397 = vpack.c.bf16 %v391, %v387
    %v398 = vld [vmem:[#allocation9] sm:$0xf]
    %v399 = vld [vmem:[#allocation9 + $0x4] sm:$0xf]
    %v400 = vld [vmem:[#allocation9 + $0x8] sm:$0xf]
    %v401 = vld [vmem:[#allocation9 + $0xc] sm:$0xf]
    %v402 = vld [vmem:[#allocation9 + $0x10] sm:$0xf]
    %v403 = vld [vmem:[#allocation9 + $0x14] sm:$0xf]
    %v404 = vld [vmem:[#allocation9 + $0x18] sm:$0xf]
    %v405 = vld [vmem:[#allocation9 + $0x1c] sm:$0xf]
    %v406 = vld [vmem:[#allocation9 + $0x20] sm:$0xf]
    %v407 = vld [vmem:[#allocation9 + $0x24] sm:$0xf]
    %v408 = vld [vmem:[#allocation9 + $0x28] sm:$0xf]
    %v409 = vld [vmem:[#allocation9 + $0x2c] sm:$0xf]
    %v410 = vld [vmem:[#allocation9 + $0x30] sm:$0xf]
    %v411 = vld [vmem:[#allocation9 + $0x34] sm:$0xf]
    %v412 = vld [vmem:[#allocation9 + $0x38] sm:$0xf]
    %v413 = vld [vmem:[#allocation9 + $0x3c] sm:$0xf]
    %v414 = vld [vmem:[#allocation9 + $0x40] sm:$0xf]
    %v415 = vld [vmem:[#allocation9 + $0x44] sm:$0xf]
    %v416 = vld [vmem:[#allocation9 + $0x48] sm:$0xf]
    %v417 = vld [vmem:[#allocation9 + $0x4c] sm:$0xf]
    %v418 = vld [vmem:[#allocation9 + $0x50] sm:$0xf]
    %v419 = vld [vmem:[#allocation9 + $0x54] sm:$0xf]
    %v420 = vld [vmem:[#allocation9 + $0x58] sm:$0xf]
    %v421 = vld [vmem:[#allocation9 + $0x5c] sm:$0xf]
    %v422 = vld [vmem:[#allocation9 + $0x60] sm:$0xf]
    %v423 = vld [vmem:[#allocation9 + $0x64] sm:$0xf]
    %v424 = vld [vmem:[#allocation9 + $0x68] sm:$0xf]
    %v425 = vld [vmem:[#allocation9 + $0x6c] sm:$0xf]
    %v426 = vld [vmem:[#allocation9 + $0x70] sm:$0xf]
    %v427 = vld [vmem:[#allocation9 + $0x74] sm:$0xf]
    %v428 = vld [vmem:[#allocation9 + $0x78] sm:$0xf]
    %v429 = vld [vmem:[#allocation9 + $0x7c] sm:$0xf]
    %v430 = vld [vmem:[#allocation9 + $0x80] sm:$0xf]
    %v431 = vld [vmem:[#allocation9 + $0x84] sm:$0xf]
    %v432 = vld [vmem:[#allocation9 + $0x88] sm:$0xf]
    %v433 = vld [vmem:[#allocation9 + $0x8c] sm:$0xf]
    %v434 = vld [vmem:[#allocation9 + $0x90] sm:$0xf]
    %v435 = vld [vmem:[#allocation9 + $0x94] sm:$0xf]
    %v436 = vld [vmem:[#allocation9 + $0x98] sm:$0xf]
    %v437 = vld [vmem:[#allocation9 + $0x9c] sm:$0xf]
    %v438 = vld [vmem:[#allocation9 + $0xa0] sm:$0xf]
    %v439 = vld [vmem:[#allocation9 + $0xa4] sm:$0xf]
    %v440 = vld [vmem:[#allocation9 + $0xa8] sm:$0xf]
    %v441 = vld [vmem:[#allocation9 + $0xac] sm:$0xf]
    %v442 = vld [vmem:[#allocation9 + $0xb0] sm:$0xf]
    %v443 = vld [vmem:[#allocation9 + $0xb4] sm:$0xf]
    %v444 = vld [vmem:[#allocation9 + $0xb8] sm:$0xf]
    %v445 = vld [vmem:[#allocation9 + $0xbc] sm:$0xf]
    %v446 = vld [vmem:[#allocation9 + $0xc0] sm:$0xf]
    %v447 = vld [vmem:[#allocation9 + $0xc4] sm:$0xf]
    %v448 = vld [vmem:[#allocation9 + $0xc8] sm:$0xf]
    %v449 = vld [vmem:[#allocation9 + $0xcc] sm:$0xf]
    %v450 = vld [vmem:[#allocation9 + $0xd0] sm:$0xf]
    %v451 = vld [vmem:[#allocation9 + $0xd4] sm:$0xf]
    %v452 = vld [vmem:[#allocation9 + $0xd8] sm:$0xf]
    %v453 = vld [vmem:[#allocation9 + $0xdc] sm:$0xf]
    %v454 = vld [vmem:[#allocation9 + $0xe0] sm:$0xf]
    %v455 = vld [vmem:[#allocation9 + $0xe4] sm:$0xf]
    %v456 = vld [vmem:[#allocation9 + $0xe8] sm:$0xf]
    %v457 = vld [vmem:[#allocation9 + $0xec] sm:$0xf]
    %v458 = vld [vmem:[#allocation9 + $0xf0] sm:$0xf]
    %v459 = vld [vmem:[#allocation9 + $0xf4] sm:$0xf]
    %v460 = vld [vmem:[#allocation9 + $0xf8] sm:$0xf]
    %v461 = vld [vmem:[#allocation9 + $0xfc] sm:$0xf]
    %v526 = vunpack.c.l.b16 %v398
    %v527 = vunpack.c.l.b16 %v399
    %v528 = vunpack.c.l.b16 %v400
    %v529 = vunpack.c.l.b16 %v401
    %v530 = vunpack.c.l.b16 %v402
    %v531 = vunpack.c.l.b16 %v403
    %v532 = vunpack.c.l.b16 %v404
    %v533 = vunpack.c.l.b16 %v405
    %v534 = vunpack.c.l.b16 %v406
    %v535 = vunpack.c.l.b16 %v407
    %v536 = vunpack.c.l.b16 %v408
    %v537 = vunpack.c.l.b16 %v409
    %v538 = vunpack.c.l.b16 %v410
    %v539 = vunpack.c.l.b16 %v411
    %v540 = vunpack.c.l.b16 %v412
    %v541 = vunpack.c.l.b16 %v413
    %v542 = vunpack.c.l.b16 %v414
    %v543 = vunpack.c.l.b16 %v415
    %v544 = vunpack.c.l.b16 %v416
    %v545 = vunpack.c.l.b16 %v417
    %v546 = vunpack.c.l.b16 %v418
    %v547 = vunpack.c.l.b16 %v419
    %v548 = vunpack.c.l.b16 %v420
    %v549 = vunpack.c.l.b16 %v421
    %v550 = vunpack.c.l.b16 %v422
    %v551 = vunpack.c.l.b16 %v423
    %v552 = vunpack.c.l.b16 %v424
    %v553 = vunpack.c.l.b16 %v425
    %v554 = vunpack.c.l.b16 %v426
    %v555 = vunpack.c.l.b16 %v427
    %v556 = vunpack.c.l.b16 %v428
    %v557 = vunpack.c.l.b16 %v429
    %v558 = vunpack.c.l.b16 %v430
    %v559 = vunpack.c.l.b16 %v431
    %v560 = vunpack.c.l.b16 %v432
    %v561 = vunpack.c.l.b16 %v433
    %v562 = vunpack.c.l.b16 %v434
    %v563 = vunpack.c.l.b16 %v435
    %v564 = vunpack.c.l.b16 %v436
    %v565 = vunpack.c.l.b16 %v437
    %v566 = vunpack.c.l.b16 %v438
    %v567 = vunpack.c.l.b16 %v439
    %v568 = vunpack.c.l.b16 %v440
    %v569 = vunpack.c.l.b16 %v441
    %v570 = vunpack.c.l.b16 %v442
    %v571 = vunpack.c.l.b16 %v443
    %v572 = vunpack.c.l.b16 %v444
    %v573 = vunpack.c.l.b16 %v445
    %v574 = vunpack.c.l.b16 %v446
    %v575 = vunpack.c.l.b16 %v447
    %v576 = vunpack.c.l.b16 %v448
    %v577 = vunpack.c.l.b16 %v449
    %v578 = vunpack.c.l.b16 %v450
    %v579 = vunpack.c.l.b16 %v451
    %v580 = vunpack.c.l.b16 %v452
    %v581 = vunpack.c.l.b16 %v453
    %v582 = vunpack.c.l.b16 %v454
    %v583 = vunpack.c.l.b16 %v455
    %v584 = vunpack.c.l.b16 %v456
    %v585 = vunpack.c.l.b16 %v457
    %v586 = vunpack.c.l.b16 %v458
    %v587 = vunpack.c.l.b16 %v459
    %v588 = vunpack.c.l.b16 %v460
    %v589 = vunpack.c.l.b16 %v461
    %v590 = vpack.c.b16 %v527, %v526
    %v591 = vpack.c.b16 %v529, %v528
    %v592 = vpack.c.b16 %v531, %v530
    %v593 = vpack.c.b16 %v533, %v532
    %v594 = vpack.c.b16 %v535, %v534
    %v595 = vpack.c.b16 %v537, %v536
    %v596 = vpack.c.b16 %v539, %v538
    %v597 = vpack.c.b16 %v541, %v540
    %v598 = vpack.c.b16 %v543, %v542
    %v599 = vpack.c.b16 %v545, %v544
    %v600 = vpack.c.b16 %v547, %v546
    %v601 = vpack.c.b16 %v549, %v548
    %v602 = vpack.c.b16 %v551, %v550
    %v603 = vpack.c.b16 %v553, %v552
    %v604 = vpack.c.b16 %v555, %v554
    %v605 = vpack.c.b16 %v557, %v556
    %v606 = vpack.c.b16 %v559, %v558
    %v607 = vpack.c.b16 %v561, %v560
    %v608 = vpack.c.b16 %v563, %v562
    %v609 = vpack.c.b16 %v565, %v564
    %v610 = vpack.c.b16 %v567, %v566
    %v611 = vpack.c.b16 %v569, %v568
    %v612 = vpack.c.b16 %v571, %v570
    %v613 = vpack.c.b16 %v573, %v572
    %v614 = vpack.c.b16 %v575, %v574
    %v615 = vpack.c.b16 %v577, %v576
    %v616 = vpack.c.b16 %v579, %v578
    %v617 = vpack.c.b16 %v581, %v580
    %v618 = vpack.c.b16 %v583, %v582
    %v619 = vpack.c.b16 %v585, %v584
    %v620 = vpack.c.b16 %v587, %v586
    %v621 = vpack.c.b16 %v589, %v588
    %654 = vmatprep.subr.bf16.mxu0 0
    %655 = vmatpush1.bf16.msra.mxu0 %v597
    %656 = vmatprep.subr.bf16.mxu0 0
    %657 = vmatpush1.bf16.msra.mxu0 %v596
    %658 = vmatprep.subr.bf16.mxu0 0
    %659 = vmatpush1.bf16.msra.mxu0 %v595
    %660 = vmatprep.subr.bf16.mxu0 0
    %661 = vmatpush1.bf16.msra.mxu0 %v594
    %662 = vmatprep.subr.bf16.mxu0 0
    %663 = vmatpush1.bf16.msra.mxu0 %v593
    %664 = vmatprep.subr.bf16.mxu0 0
    %665 = vmatpush1.bf16.msra.mxu0 %v592
    %666 = vmatprep.subr.bf16.mxu0 0
    %667 = vmatpush1.bf16.msra.mxu0 %v591
    %668 = vmatprep.subr.bf16.mxu0 0
    %669 = vmatpush1.bf16.msra.mxu0 %v590
    %670 = vmatprep.subr.bf16.mxu0 0
    %671 = vmatpush2.bf16.msra.mxu0 %v605
    %672 = vmatprep.subr.bf16.mxu0 0
    %673 = vmatpush2.bf16.msra.mxu0 %v604
    %674 = vmatprep.subr.bf16.mxu0 0
    %675 = vmatpush2.bf16.msra.mxu0 %v603
    %676 = vmatprep.subr.bf16.mxu0 0
    %677 = vmatpush2.bf16.msra.mxu0 %v602
    %678 = vmatprep.subr.bf16.mxu0 0
    %679 = vmatpush2.bf16.msra.mxu0 %v601
    %680 = vmatprep.subr.bf16.mxu0 0
    %681 = vmatpush2.bf16.msra.mxu0 %v600
    %682 = vmatprep.subr.bf16.mxu0 0
    %683 = vmatpush2.bf16.msra.mxu0 %v599
    %684 = vmatprep.subr.bf16.mxu0 0
    %685 = vmatpush2.bf16.msra.mxu0 %v598
    %686 = vmatprep.mubr.bf16.mxu0 %v395
    %687 = vmatmul.mubr.bf16.gmra.mxu0 %v394
    %v688 = vpop.f32.mrf.mxu0
    %v689 = vadd.f32 0.0, %v688
    %v690 = vpop.f32.mrf.mxu0
    %v691 = vpop.f32.mrf.mxu0
    %v692 = vadd.f32 0.0, %v691
    %v693 = vpop.f32.mrf.mxu0
    %694 = vdwg.mxu0
    %695 = vmatprep.subr.bf16.mxu0 0
    %696 = vmatpush1.bf16.msra.mxu0 %v613
    %697 = vmatprep.subr.bf16.mxu0 0
    %698 = vmatpush1.bf16.msra.mxu0 %v612
    %699 = vmatprep.subr.bf16.mxu0 0
    %700 = vmatpush1.bf16.msra.mxu0 %v611
    %701 = vmatprep.subr.bf16.mxu0 0
    %702 = vmatpush1.bf16.msra.mxu0 %v610
    %703 = vmatprep.subr.bf16.mxu0 0
    %704 = vmatpush1.bf16.msra.mxu0 %v609
    %705 = vmatprep.subr.bf16.mxu0 0
    %706 = vmatpush1.bf16.msra.mxu0 %v608
    %707 = vmatprep.subr.bf16.mxu0 0
    %708 = vmatpush1.bf16.msra.mxu0 %v607
    %709 = vmatprep.subr.bf16.mxu0 0
    %710 = vmatpush1.bf16.msra.mxu0 %v606
    %711 = vmatprep.subr.bf16.mxu0 0
    %712 = vmatpush2.bf16.msra.mxu0 %v621
    %713 = vmatprep.subr.bf16.mxu0 0
    %714 = vmatpush2.bf16.msra.mxu0 %v620
    %715 = vmatprep.subr.bf16.mxu0 0
    %716 = vmatpush2.bf16.msra.mxu0 %v619
    %717 = vmatprep.subr.bf16.mxu0 0
    %718 = vmatpush2.bf16.msra.mxu0 %v618
    %719 = vmatprep.subr.bf16.mxu0 0
    %720 = vmatpush2.bf16.msra.mxu0 %v617
    %721 = vmatprep.subr.bf16.mxu0 0
    %722 = vmatpush2.bf16.msra.mxu0 %v616
    %723 = vmatprep.subr.bf16.mxu0 0
    %724 = vmatpush2.bf16.msra.mxu0 %v615
    %725 = vmatprep.subr.bf16.mxu0 0
    %726 = vmatpush2.bf16.msra.mxu0 %v614
    %727 = vmatprep.mubr.bf16.mxu0 %v397
    %728 = vmatmul.mubr.bf16.gmra.mxu0 %v396
    %v729 = vpop.f32.mrf.mxu0
    %v730 = vadd.f32 %v689, %v729
    %v731 = vpop.f32.mrf.mxu0
    %v732 = vpop.f32.mrf.mxu0
    %v733 = vadd.f32 %v692, %v732
    %v734 = vpop.f32.mrf.mxu0
    %735 = vdwg.mxu0
    %v736 = vadd.f32 %v392, %v730
    %v737 = vadd.f32 %v393, %v733
    %738 = vst [vmem:[#allocation2] sm:$0xff] %v736
    %739 = vst [vmem:[#allocation2 + $0x8] sm:$0xff] %v737
    // Predicated region
    $region30: #{poswise_ffn_forward.1} parent=1 // pred_check
      %p740 = pneg %p57
    $region31: #{poswise_ffn_forward.1} parent=1 // pred_check_branch
      %742 = sbr.rel (%p740) target = $region33
    $region32: #{poswise_ffn_forward.1} parent=1 // pred_region
      %v743 = vld [vmem:[#allocation2] sm:$0xff]
      %v744 = vld [vmem:[#allocation2 + $0x8] sm:$0xff]
      %745 = vst [vmem:[#allocation10] sm:$0xff] %v743
      %746 = vst [vmem:[#allocation10 + $0x8] sm:$0xff] %v744
    $region33: #{poswise_ffn_forward.1} parent=1 // pred_fallthru
      _
    // Predicated region
    $region34: #{poswise_ffn_forward.1} parent=1 // pred_check
      _
    $region35: #{poswise_ffn_forward.1} parent=1 // pred_check_branch
      %748 = sbr.rel (0) target = $region37
    $region36: #{poswise_ffn_forward.1} parent=1 // pred_region
      %s750 = ssub.s32 256, 256
      %751 = vsyncadd [#allocation6], %s750
      %s752 = sshll.u32 [#allocation10], 4
      %s753 = int_to_ptr.vmem [resolvable:$true] %s752
      %758 = dma.vmem_to_hbm [thread:$0]  %s753, 256, %s3, [#allocation6], 128, 128, 8
    $region37: #{poswise_ffn_forward.1} parent=1 // pred_fallthru
      _
    // Predicated region
    $region38: #{poswise_ffn_forward.1} parent=1 // pred_check
      _
    $region39: #{poswise_ffn_forward.1} parent=1 // pred_check_branch
      %760 = sbr.rel (0) target = $region41
    $region40: #{poswise_ffn_forward.1} parent=1 // pred_region
      %761 = dma.done [#allocation6], 256
    $region41: #{poswise_ffn_forward.1} parent=1 // pred_fallthru
      _
    %762 = vsyncpa [#allocation5], 1
    %763 = vsyncpa [#allocation8], 1
    %764 = vsyncpa [#allocation6], 1

</llo_original>
